<compile_context>
chip_gen: v7x
topology: tpu7x:2x2x1
jax: 0.10.0
libtpu: 0.0.40
codegen_flags: <defaults>
</compile_context>

<pallas_src>
import math
import jax
import jax.numpy as jnp
from jax.experimental import pallas as pl
from jax.experimental.pallas import tpu as pltpu

_INV_SQRT2 = 0.7071067811865476


def _gelu_exact(x):
    # nn.GELU() default = exact erf-based GELU (computed in f32).
    return 0.5 * x * (1.0 + jax.lax.erf(x * _INV_SQRT2))


def _adapter_kernel(x_ref, wd_ref, bd_ref, wu_ref, bu_ref, out_ref):
    """Grid axis 0 = row tiles of B*S (parallel).

    x_ref  : (T, E)     bf16   row tile of flattened inputs
    wd_ref : (E, H)     bf16   down_proj weight (in, out)
    bd_ref : (1, H)     f32    down_proj bias
    wu_ref : (H, L*U)   bf16   ALL up_proj weights fused along lanes
    bu_ref : (1, L*U)   f32    ALL up_proj biases fused along lanes
    out_ref: (T, L*U)   f32    fused per-row output slab (lane-dense)
    """
    h = jnp.dot(x_ref[...], wd_ref[...], preferred_element_type=jnp.float32)
    h = _gelu_exact(h + bd_ref[...])
    o = jnp.dot(h.astype(jnp.bfloat16), wu_ref[...],
                preferred_element_type=jnp.float32)
    out_ref[...] = _gelu_exact(o + bu_ref[...])


def domain_prompt_adapter(inputs, params, *, num_layers, num_heads, num_keys,
                          d_kv, tile_rows=512,
                          vmem_limit_bytes=64 * 1024 * 1024):
    B, S, E = inputs.shape
    H = params["wd"].shape[1]
    U = num_heads * d_kv * num_keys
    LU = num_layers * U
    BS = B * S

    # ---- wrapper-side layout plumbing (no compute hoisted) -----------------
    x2 = inputs.reshape(BS, E).astype(jnp.bfloat16)
    wd = params["wd"].astype(jnp.bfloat16)
    bd = params["bd"].reshape(1, H).astype(jnp.float32)
    # (L, H, U) -> (H, L, U) -> (H, L*U): column block l*U:(l+1)*U == up_proj[l]
    wu = jnp.transpose(params["wu"], (1, 0, 2)).reshape(H, LU).astype(jnp.bfloat16)
    bu = params["bu"].reshape(1, LU).astype(jnp.float32)

    # ---- row tiling: multiple of 8 sublanes, sized well under VMEM ---------
    T = min(tile_rows, BS)
    if T < BS:
        T = max(8, (T // 8) * 8)
    grid = (pl.cdiv(BS, T),)

    cost = pl.CostEstimate(
        flops=2 * BS * E * H + 2 * BS * H * LU,
        transcendentals=BS * (H + LU),
        bytes_accessed=(BS * E * 2 + E * H * 2 + H * 4
                        + H * LU * 2 + LU * 4 + BS * LU * 4),
    )

    out = pl.pallas_call(
        _adapter_kernel,
        out_shape=jax.ShapeDtypeStruct((BS, LU), jnp.float32),
        grid_spec=pltpu.PrefetchScalarGridSpec(
            num_scalar_prefetch=0,
            grid=grid,
            in_specs=[
                pl.BlockSpec((T, E), lambda i: (i, 0)),     # x row tile
                pl.BlockSpec((E, H), lambda i: (0, 0)),     # wd (resident)
                pl.BlockSpec((1, H), lambda i: (0, 0)),     # bd (resident)
                pl.BlockSpec((H, LU), lambda i: (0, 0)),    # fused wu (resident)
                pl.BlockSpec((1, LU), lambda i: (0, 0)),    # fused bu (resident)
            ],
            out_specs=pl.BlockSpec((T, LU), lambda i: (i, 0)),
        ),
        compiler_params=pltpu.CompilerParams(
            dimension_semantics=("parallel",),
            vmem_limit_bytes=vmem_limit_bytes),
        cost_estimate=cost,
    )(x2, wd, bd, wu, bu)

    # ---- glue: torch's .view(B, NH*NK, S, D) + .split(NH, dim=1) ------------
    # The torch .view interleaves S into the head axis (row-major reinterpret),
    # so the per-key split cannot be expressed as a contiguous kernel output
    # layout without an extra in-kernel transpose; kept as cheap wrapper slices.
    all_layers = []
    for li in range(num_layers):
        o = out[:, li * U:(li + 1) * U].reshape(B, num_heads * num_keys, S, d_kv)
        splits = tuple(o[:, k * num_heads:(k + 1) * num_heads]
                       for k in range(num_keys))
        all_layers.append(splits)
    return all_layers


def _reference(inputs, params, *, num_layers, num_heads, num_keys, d_kv):
    B, S, E = inputs.shape
    h = jax.nn.gelu(inputs @ params["wd"] + params["bd"][0], approximate=False)
    outs = []
    for i in range(num_layers):
        o = jax.nn.gelu(h @ params["wu"][i] + params["bu"][i, 0],
                        approximate=False)
        o = o.reshape(B, num_heads * num_keys, S, d_kv)
        outs.append(tuple(o[:, k * num_heads:(k + 1) * num_heads]
                          for k in range(num_keys)))
    return outs


if __name__ == "__main__":
    # Small config consistent with the module's __init__.
    B, S = 2, 8
    input_embed_size = 32
    hidden_size = 16
    d_kv = 8
    num_heads = 2
    num_keys = 4
    num_layers = 2
    U = num_heads * d_kv * num_keys  # 64  -> fused lane width L*U = 128

    key = jax.random.PRNGKey(0)
    k_x, k_wd, k_bd, k_wu, k_bu = jax.random.split(key, 5)

    inputs = jax.random.normal(k_x, (B, S, input_embed_size), dtype=jnp.float32)

    # Deterministic parameter init (synthetic; weights stored as (in, out)).
    params = {
        "wd": jax.random.normal(k_wd, (input_embed_size, hidden_size),
                                dtype=jnp.float32) * (1.0 / math.sqrt(input_embed_size)),
        "bd": jax.random.normal(k_bd, (1, hidden_size), dtype=jnp.float32) * 0.01,
        "wu": jax.random.normal(k_wu, (num_layers, hidden_size, U),
                                dtype=jnp.float32) * (1.0 / math.sqrt(hidden_size)),
        "bu": jax.random.normal(k_bu, (num_layers, 1, U), dtype=jnp.float32) * 0.01,
    }

    result = domain_prompt_adapter(
        inputs, params,
        num_layers=num_layers, num_heads=num_heads,
        num_keys=num_keys, d_kv=d_kv)
    jax.block_until_ready(result)

    ref = _reference(
        inputs, params,
        num_layers=num_layers, num_heads=num_heads,
        num_keys=num_keys, d_kv=d_kv)

    # bf16 matmul inputs (f32 accumulation) -> relaxed tolerance vs f32 ref.
    for li in range(num_layers):
        for ki in range(num_keys):
            assert result[li][ki].shape == (B, num_heads, S, d_kv)
            assert jnp.allclose(result[li][ki], ref[li][ki], atol=5e-2, rtol=5e-2)

    print("KERNEL_OK")
</pallas_src>

<mosaic_0001>
module attributes {stable_mosaic.version = 11 : i64} {
  func.func @_adapter_kernel(%arg0: i32, %arg1: memref<16x32xbf16, #tpu.memory_space<vmem>>, %arg2: memref<32x16xbf16, #tpu.memory_space<vmem>>, %arg3: memref<1x16xf32, #tpu.memory_space<vmem>>, %arg4: memref<16x128xbf16, #tpu.memory_space<vmem>>, %arg5: memref<1x128xf32, #tpu.memory_space<vmem>>, %arg6: memref<16x128xf32, #tpu.memory_space<vmem>>) attributes {dimension_semantics = [#tpu.dimension_semantics<parallel>], iteration_bounds = array<i64: 1>, scalar_prefetch = 0 : i64, scratch_operands = 0 : i64, tpu.core_type = #tpu.core_type<tc>, window_params = [{transform_indices = @transform_0, window_bounds = array<i64: 16, 32>}, {pipeline_mode = #tpu.pipeline_mode<synchronous>, transform_indices = @transform_1, window_bounds = array<i64: 32, 16>}, {pipeline_mode = #tpu.pipeline_mode<synchronous>, transform_indices = @transform_2, window_bounds = array<i64: 1, 16>}, {pipeline_mode = #tpu.pipeline_mode<synchronous>, transform_indices = @transform_3, window_bounds = array<i64: 16, 128>}, {pipeline_mode = #tpu.pipeline_mode<synchronous>, transform_indices = @transform_4, window_bounds = array<i64: 1, 128>}, {transform_indices = @transform_5, window_bounds = array<i64: 16, 128>}]} {
    %c0 = arith.constant 0 : index
    %c0_0 = arith.constant 0 : index
    %0 = vector.load %arg1[%c0, %c0_0] : memref<16x32xbf16, #tpu.memory_space<vmem>>, vector<16x32xbf16>
    %c0_1 = arith.constant 0 : index
    %c0_2 = arith.constant 0 : index
    %1 = vector.load %arg2[%c0_1, %c0_2] : memref<32x16xbf16, #tpu.memory_space<vmem>>, vector<32x16xbf16>
    %cst = arith.constant dense<0.000000e+00> : vector<16x16xf32>
    %2 = tpu.matmul %0, %1, %cst {dimension_numbers = #tpu.dot_dimension_numbers<[1], [0], [0], [1], [0, 0, 1, 1], [], []>} : vector<16x32xbf16>, vector<32x16xbf16>, vector<16x16xf32> -> vector<16x16xf32>
    %c0_3 = arith.constant 0 : index
    %c0_4 = arith.constant 0 : index
    %3 = vector.load %arg3[%c0_3, %c0_4] : memref<1x16xf32, #tpu.memory_space<vmem>>, vector<1x16xf32>
    %4 = vector.broadcast %3 : vector<1x16xf32> to vector<16x16xf32>
    %5 = arith.addf %2, %4 : vector<16x16xf32>
    %cst_5 = arith.constant 5.000000e-01 : f32
    %6 = vector.broadcast %cst_5 : f32 to vector<16x16xf32>
    %7 = arith.mulf %6, %5 : vector<16x16xf32>
    %cst_6 = arith.constant 0.707106769 : f32
    %8 = vector.broadcast %cst_6 : f32 to vector<16x16xf32>
    %9 = arith.mulf %5, %8 : vector<16x16xf32>
    %10 = math.erf %9 : vector<16x16xf32>
    %cst_7 = arith.constant 1.000000e+00 : f32
    %11 = vector.broadcast %cst_7 : f32 to vector<16x16xf32>
    %12 = arith.addf %11, %10 : vector<16x16xf32>
    %13 = arith.mulf %7, %12 : vector<16x16xf32>
    %14 = arith.truncf %13 : vector<16x16xf32> to vector<16x16xbf16>
    %c0_8 = arith.constant 0 : index
    %c0_9 = arith.constant 0 : index
    %15 = vector.load %arg4[%c0_8, %c0_9] : memref<16x128xbf16, #tpu.memory_space<vmem>>, vector<16x128xbf16>
    %cst_10 = arith.constant dense<0.000000e+00> : vector<16x128xf32>
    %16 = tpu.matmul %14, %15, %cst_10 {dimension_numbers = #tpu.dot_dimension_numbers<[1], [0], [0], [1], [0, 0, 1, 1], [], []>} : vector<16x16xbf16>, vector<16x128xbf16>, vector<16x128xf32> -> vector<16x128xf32>
    %c0_11 = arith.constant 0 : index
    %c0_12 = arith.constant 0 : index
    %17 = vector.load %arg5[%c0_11, %c0_12] : memref<1x128xf32, #tpu.memory_space<vmem>>, vector<1x128xf32>
    %18 = vector.broadcast %17 : vector<1x128xf32> to vector<16x128xf32>
    %19 = arith.addf %16, %18 : vector<16x128xf32>
    %cst_13 = arith.constant 5.000000e-01 : f32
    %20 = vector.broadcast %cst_13 : f32 to vector<16x128xf32>
    %21 = arith.mulf %20, %19 : vector<16x128xf32>
    %cst_14 = arith.constant 0.707106769 : f32
    %22 = vector.broadcast %cst_14 : f32 to vector<16x128xf32>
    %23 = arith.mulf %19, %22 : vector<16x128xf32>
    %24 = math.erf %23 : vector<16x128xf32>
    %cst_15 = arith.constant 1.000000e+00 : f32
    %25 = vector.broadcast %cst_15 : f32 to vector<16x128xf32>
    %26 = arith.addf %25, %24 : vector<16x128xf32>
    %27 = arith.mulf %21, %26 : vector<16x128xf32>
    %c0_16 = arith.constant 0 : index
    %c0_17 = arith.constant 0 : index
    %28 = vector.load %arg6[%c0_16, %c0_17] : memref<16x128xf32, #tpu.memory_space<vmem>>, vector<16x128xf32>
    tpu.vector_store %arg6[%c0_16, %c0_17], %27 {strides = array<i32>} : memref<16x128xf32, #tpu.memory_space<vmem>>, vector<16x128xf32>,
    return
  }
  func.func @transform_0(%arg0: i32) -> (i32, i32) {
    %c0_i32 = arith.constant 0 : i32
    %c0_i32_0 = arith.constant 0 : i32
    return %arg0, %c0_i32 : i32, i32
  }
  func.func @transform_1(%arg0: i32) -> (i32, i32) {
    %c0_i32 = arith.constant 0 : i32
    %c0_i32_0 = arith.constant 0 : i32
    %c0_i32_1 = arith.constant 0 : i32
    return %c0_i32, %c0_i32_0 : i32, i32
  }
  func.func @transform_2(%arg0: i32) -> (i32, i32) {
    %c0_i32 = arith.constant 0 : i32
    %c0_i32_0 = arith.constant 0 : i32
    %c0_i32_1 = arith.constant 0 : i32
    return %c0_i32, %c0_i32_0 : i32, i32
  }
  func.func @transform_3(%arg0: i32) -> (i32, i32) {
    %c0_i32 = arith.constant 0 : i32
    %c0_i32_0 = arith.constant 0 : i32
    %c0_i32_1 = arith.constant 0 : i32
    return %c0_i32, %c0_i32_0 : i32, i32
  }
  func.func @transform_4(%arg0: i32) -> (i32, i32) {
    %c0_i32 = arith.constant 0 : i32
    %c0_i32_0 = arith.constant 0 : i32
    %c0_i32_1 = arith.constant 0 : i32
    return %c0_i32, %c0_i32_0 : i32, i32
  }
  func.func @transform_5(%arg0: i32) -> (i32, i32) {
    %c0_i32 = arith.constant 0 : i32
    %c0_i32_0 = arith.constant 0 : i32
    return %arg0, %c0_i32 : i32, i32
  }
}

</mosaic_0001>

<llo_original>
// kernel: tpu_custom_call.1
$region0: #{tpu_custom_call.1}
  #allocation0 [shape = 'u32[]', space=smem, size = 0x4, offset = 0x4, fixed_abs, tag = 'smem constant byte address 0x4 - core index']
  #allocation1 [shape = 'u32[144,128]{1,0:T(1,128)}', space=vmem, size = 0x12000, scoped, tag = 'internal scratch']
  %s0 = inlined_call_operand.hbm [shape: bf16[16,32], index: 0, kind: input, shape index: {}]
  %s1 = inlined_call_operand.hbm [shape: bf16[32,16], index: 1, kind: input, shape index: {}]
  %s2 = inlined_call_operand.hbm [shape: f32[1,16], index: 2, kind: input, shape index: {}]
  %s3 = inlined_call_operand.hbm [shape: bf16[16,128], index: 3, kind: input, shape index: {}]
  %s4 = inlined_call_operand.hbm [shape: f32[1,128], index: 4, kind: input, shape index: {}]
  %s5 = inlined_call_operand.hbm [shape: f32[16,128], index: 5, kind: output, shape index: {}]
  %s6 = sld [smem:[#allocation0]]
  $region50: #{tpu_custom_call.1} parent=0
    _
  %s8 = ssub.s32 1, %s6
  %s9 = scalar_select 0, %s8, %s6
  $region1: #{tpu_custom_call.1} parent=0
    #allocation2 [shape = 'u8[4096]{0}', space=vmem, size = 0x1000, scoped, tag = 'input window, operand 0, single buffered']
    #allocation3 [shape = 's32[1]{0}', space=sflag, size = 0x4, scoped, tag = 'scoped memory for tpu_custom_call.1']
    #allocation4 [shape = 's32[1]{0}', space=sflag, size = 0x4, scoped, tag = 'scoped memory for tpu_custom_call.1']
    #allocation5 [shape = 'u8[8192]{0}', space=vmem, size = 0x2000, scoped, tag = 'input window, operand 1, single buffered']
    #allocation6 [shape = 's32[1]{0}', space=sflag, size = 0x4, scoped, tag = 'scoped memory for tpu_custom_call.1']
    #allocation7 [shape = 'u8[512]{0}', space=vmem, size = 0x400, scoped, tag = 'input window, operand 2, single buffered']
    #allocation8 [shape = 'u8[4096]{0}', space=vmem, size = 0x1000, scoped, tag = 'input window, operand 3, single buffered']
    #allocation9 [shape = 's32[1]{0}', space=sflag, size = 0x4, scoped, tag = 'scoped memory for tpu_custom_call.1']
    #allocation10 [shape = 'u8[512]{0}', space=vmem, size = 0x400, scoped, tag = 'input window, operand 4, single buffered']
    #allocation11 [shape = 'u8[8192]{0}', space=vmem, size = 0x2000, scoped, tag = 'output window, operand 0, single buffered']
    %10 = vsyncpa [#allocation3], 0
    %11 = vsyncpa [#allocation6], 0
    %12 = vsyncpa [#allocation9], 0
    %13 = vsyncpa [#allocation4], 0
    // Predicated region
    $region2: #{tpu_custom_call.1} parent=1 // pred_check
      _
    $region3: #{tpu_custom_call.1} parent=1 // pred_check_branch
      %15 = sbr.rel (0) target = $region5
    $region4: #{tpu_custom_call.1} parent=1 // pred_region
      %s17 = ssub.s32 128, 128
      %18 = vsyncadd [#allocation3], %s17
      %s19 = sshll.u32 [#allocation2], 4
      %s20 = int_to_ptr.vmem [resolvable:$true] %s19
      %25 = dma.hbm_to_vmem [thread:$0]  %s0, 128, %s20, [#allocation3], 64, 64, 4
    $region5: #{tpu_custom_call.1} parent=1 // pred_fallthru
      _
    // Predicated region
    $region6: #{tpu_custom_call.1} parent=1 // pred_check
      _
    $region7: #{tpu_custom_call.1} parent=1 // pred_check_branch
      %27 = sbr.rel (0) target = $region9
    $region8: #{tpu_custom_call.1} parent=1 // pred_region
      %s29 = ssub.s32 256, 256
      %30 = vsyncadd [#allocation6], %s29
      %s31 = sshll.u32 [#allocation5], 4
      %s32 = int_to_ptr.vmem [resolvable:$true] %s31
      %37 = dma.hbm_to_vmem [thread:$0]  %s1, 256, %s32, [#allocation6], 64, 64, 4
    $region9: #{tpu_custom_call.1} parent=1 // pred_fallthru
      _
    // Predicated region
    $region10: #{tpu_custom_call.1} parent=1 // pred_check
      _
    $region11: #{tpu_custom_call.1} parent=1 // pred_check_branch
      %39 = sbr.rel (0) target = $region13
    $region12: #{tpu_custom_call.1} parent=1 // pred_region
      %s41 = ssub.s32 16, 16
      %42 = vsyncadd [#allocation6], %s41
      %s44 = sshll.u32 [#allocation7], 4
      %s45 = int_to_ptr.vmem [resolvable:$true] %s44
      %47 = dma.hbm_to_vmem [thread:$0]  %s2, 16, %s45, [#allocation6]
    $region13: #{tpu_custom_call.1} parent=1 // pred_fallthru
      _
    // Predicated region
    $region14: #{tpu_custom_call.1} parent=1 // pred_check
      _
    $region15: #{tpu_custom_call.1} parent=1 // pred_check_branch
      %49 = sbr.rel (0) target = $region17
    $region16: #{tpu_custom_call.1} parent=1 // pred_region
      %s51 = ssub.s32 128, 128
      %52 = vsyncadd [#allocation9], %s51
      %s53 = sshll.u32 [#allocation8], 4
      %s54 = int_to_ptr.vmem [resolvable:$true] %s53
      %59 = dma.hbm_to_vmem [thread:$0]  %s3, 128, %s54, [#allocation9], 64, 64, 4
    $region17: #{tpu_custom_call.1} parent=1 // pred_fallthru
      _
    // Predicated region
    $region18: #{tpu_custom_call.1} parent=1 // pred_check
      _
    $region19: #{tpu_custom_call.1} parent=1 // pred_check_branch
      %61 = sbr.rel (0) target = $region21
    $region20: #{tpu_custom_call.1} parent=1 // pred_region
      %s63 = ssub.s32 16, 16
      %64 = vsyncadd [#allocation9], %s63
      %s66 = sshll.u32 [#allocation10], 4
      %s67 = int_to_ptr.vmem [resolvable:$true] %s66
      %69 = dma.hbm_to_vmem [thread:$0]  %s4, 16, %s67, [#allocation9]
    $region21: #{tpu_custom_call.1} parent=1 // pred_fallthru
      _
    // Predicated region
    $region22: #{tpu_custom_call.1} parent=1 // pred_check
      _
    $region23: #{tpu_custom_call.1} parent=1 // pred_check_branch
      %71 = sbr.rel (0) target = $region25
    $region24: #{tpu_custom_call.1} parent=1 // pred_region
      %72 = dma.done [#allocation3], 128
    $region25: #{tpu_custom_call.1} parent=1 // pred_fallthru
      _
    // Predicated region
    $region26: #{tpu_custom_call.1} parent=1 // pred_check
      _
    $region27: #{tpu_custom_call.1} parent=1 // pred_check_branch
      %74 = sbr.rel (0) target = $region29
    $region28: #{tpu_custom_call.1} parent=1 // pred_region
      %75 = dma.done [#allocation6], 256
    $region29: #{tpu_custom_call.1} parent=1 // pred_fallthru
      _
    // Predicated region
    $region30: #{tpu_custom_call.1} parent=1 // pred_check
      _
    $region31: #{tpu_custom_call.1} parent=1 // pred_check_branch
      %77 = sbr.rel (0) target = $region33
    $region32: #{tpu_custom_call.1} parent=1 // pred_region
      %78 = dma.done [#allocation6], 16
    $region33: #{tpu_custom_call.1} parent=1 // pred_fallthru
      _
    // Predicated region
    $region34: #{tpu_custom_call.1} parent=1 // pred_check
      _
    $region35: #{tpu_custom_call.1} parent=1 // pred_check_branch
      %80 = sbr.rel (0) target = $region37
    $region36: #{tpu_custom_call.1} parent=1 // pred_region
      %81 = dma.done [#allocation9], 128
    $region37: #{tpu_custom_call.1} parent=1 // pred_fallthru
      _
    // Predicated region
    $region38: #{tpu_custom_call.1} parent=1 // pred_check
      _
    $region39: #{tpu_custom_call.1} parent=1 // pred_check_branch
      %83 = sbr.rel (0) target = $region41
    $region40: #{tpu_custom_call.1} parent=1 // pred_region
      %84 = dma.done [#allocation9], 16
    $region41: #{tpu_custom_call.1} parent=1 // pred_fallthru
      _
    %v86 = vld [vmem:[#allocation2] sm:$0xf]
    %v87 = vld [vmem:[#allocation2 + $0x4] sm:$0xf]
    %v88 = vld [vmem:[#allocation5] sm:$0xf]
    %v89 = vld [vmem:[#allocation5 + $0x4] sm:$0xf]
    %v90 = vld [vmem:[#allocation5 + $0x8] sm:$0xf]
    %v91 = vld [vmem:[#allocation5 + $0xc] sm:$0xf]
    %v92 = vld [vmem:[#allocation7] sm:$0x1]
    %v94 = vlaneseq
    %v95 = vshrl.u32 %v94, 7
    %v96 = vsub.s32 0, %v95
    %v97 = vrot.slane %v92, %v96
    %v101 = vunpack.c.l.b16 %v86
    %v102 = vunpack.c.l.b16 %v87
    %v103 = vpack.c.b16 %v102, %v101
    %v108 = vunpack.c.l.b16 %v88
    %v109 = vunpack.c.l.b16 %v89
    %v110 = vunpack.c.l.b16 %v90
    %v111 = vunpack.c.l.b16 %v91
    %v112 = vpack.c.b16 %v109, %v108
    %v113 = vpack.c.b16 %v111, %v110
    %vm116 = vcmask 261120
    %v118 = vsel %vm116, %v103, 0
    %120 = vmatprep.subr.bf16.mxu0 0
    %121 = vmatpush1.bf16.msra.mxu0 %v112
    %122 = vmatprep.subr.bf16.mxu0 0
    %123 = vmatpush1.bf16.msra.mxu0 %v113
    %124 = vmatprep.subr.bf16.mxu0 0
    %125 = vmatpush1.bf16.msra.mxu0 0
    %126 = vmatprep.subr.bf16.mxu0 0
    %127 = vmatpush1.bf16.msra.mxu0 0
    %128 = vmatprep.subr.bf16.mxu0 0
    %129 = vmatpush1.bf16.msra.mxu0 0
    %130 = vmatprep.subr.bf16.mxu0 0
    %131 = vmatpush1.bf16.msra.mxu0 0
    %132 = vmatprep.subr.bf16.mxu0 0
    %133 = vmatpush1.bf16.msra.mxu0 0
    %134 = vmatprep.subr.bf16.mxu0 0
    %135 = vmatpush1.bf16.msra.mxu0 0
    %136 = vmatprep.subr.bf16.mxu0 0
    %137 = vmatpush1.bf16.msra.mxu0 0
    %138 = vmatprep.subr.bf16.mxu0 0
    %139 = vmatpush1.bf16.msra.mxu0 0
    %140 = vmatprep.subr.bf16.mxu0 0
    %141 = vmatpush1.bf16.msra.mxu0 0
    %142 = vmatprep.subr.bf16.mxu0 0
    %143 = vmatpush1.bf16.msra.mxu0 0
    %144 = vmatprep.subr.bf16.mxu0 0
    %145 = vmatpush1.bf16.msra.mxu0 0
    %146 = vmatprep.subr.bf16.mxu0 0
    %147 = vmatpush1.bf16.msra.mxu0 0
    %148 = vmatprep.subr.bf16.mxu0 0
    %149 = vmatpush1.bf16.msra.mxu0 0
    %150 = vmatprep.subr.bf16.mxu0 0
    %151 = vmatpush1.bf16.msra.mxu0 0
    %152 = vmatprep.mubr.bf16.mxu0 0
    %153 = vmatmul.mubr.bf16.gmra.mrb[0].mxu0 %v118
    %v154 = vpop.f32.mrb[0].mxu0
    %v155 = vadd.f32 %v97, %v154
    %v156 = vpop.f32.mrb[0].mxu0
    %v157 = vpop.f32.mrb[0].mxu0
    %v158 = vadd.f32 %v97, %v157
    %v159 = vpop.f32.mrb[0].mxu0
    %160 = vdwg.mxu0
    %v161 = vmul.f32 %v155, 0.5
    %v162 = vmul.f32 %v158, 0.5
    %v163 = vmul.f32 %v155, 0.70710677
    %v164 = vmul.f32 %v158, 0.70710677
    %v165 = verf.f32.pop %v163
    %v166 = verf.f32.pop %v164
    %v167 = vadd.f32 %v165, 1.0
    %v168 = vadd.f32 %v166, 1.0
    %v169 = vmul.f32 %v161, %v167
    %v170 = vmul.f32 %v162, %v168
    %v171 = vpack.c.bf16 %v170, %v169
    %v172 = vld [vmem:[#allocation8] sm:$0xf]
    %v173 = vld [vmem:[#allocation8 + $0x4] sm:$0xf]
    %v174 = vld [vmem:[#allocation10] sm:$0x1]
    %v176 = vlaneseq
    %v177 = vshrl.u32 %v176, 7
    %v178 = vsub.s32 0, %v177
    %v179 = vrot.slane %v174, %v178
    %v183 = vunpack.c.l.b16 %v172
    %v184 = vunpack.c.l.b16 %v173
    %v185 = vpack.c.b16 %v184, %v183
    %vm187 = vcmask 130048
    %v189 = vsel %vm187, %v171, 0
    %191 = vmatprep.subr.bf16.mxu0 0
    %192 = vmatpush1.bf16.msra.mxu0 %v185
    %193 = vmatprep.subr.bf16.mxu0 0
    %194 = vmatpush1.bf16.msra.mxu0 0
    %195 = vmatprep.subr.bf16.mxu0 0
    %196 = vmatpush1.bf16.msra.mxu0 0
    %197 = vmatprep.subr.bf16.mxu0 0
    %198 = vmatpush1.bf16.msra.mxu0 0
    %199 = vmatprep.subr.bf16.mxu0 0
    %200 = vmatpush1.bf16.msra.mxu0 0
    %201 = vmatprep.subr.bf16.mxu0 0
    %202 = vmatpush1.bf16.msra.mxu0 0
    %203 = vmatprep.subr.bf16.mxu0 0
    %204 = vmatpush1.bf16.msra.mxu0 0
    %205 = vmatprep.subr.bf16.mxu0 0
    %206 = vmatpush1.bf16.msra.mxu0 0
    %207 = vmatprep.subr.bf16.mxu0 0
    %208 = vmatpush1.bf16.msra.mxu0 0
    %209 = vmatprep.subr.bf16.mxu0 0
    %210 = vmatpush1.bf16.msra.mxu0 0
    %211 = vmatprep.subr.bf16.mxu0 0
    %212 = vmatpush1.bf16.msra.mxu0 0
    %213 = vmatprep.subr.bf16.mxu0 0
    %214 = vmatpush1.bf16.msra.mxu0 0
    %215 = vmatprep.subr.bf16.mxu0 0
    %216 = vmatpush1.bf16.msra.mxu0 0
    %217 = vmatprep.subr.bf16.mxu0 0
    %218 = vmatpush1.bf16.msra.mxu0 0
    %219 = vmatprep.subr.bf16.mxu0 0
    %220 = vmatpush1.bf16.msra.mxu0 0
    %221 = vmatprep.subr.bf16.mxu0 0
    %222 = vmatpush1.bf16.msra.mxu0 0
    %223 = vmatprep.mubr.bf16.mxu0 0
    %224 = vmatmul.mubr.bf16.gmra.mrb[0].mxu0 %v189
    %v225 = vpop.f32.mrb[0].mxu0
    %v226 = vadd.f32 %v179, %v225
    %v227 = vpop.f32.mrb[0].mxu0
    %v228 = vpop.f32.mrb[0].mxu0
    %v229 = vadd.f32 %v179, %v228
    %v230 = vpop.f32.mrb[0].mxu0
    %231 = vdwg.mxu0
    %v232 = vmul.f32 %v226, 0.5
    %v233 = vmul.f32 %v229, 0.5
    %v234 = vmul.f32 %v226, 0.70710677
    %v235 = vmul.f32 %v229, 0.70710677
    %v236 = verf.f32.pop %v234
    %v237 = verf.f32.pop %v235
    %v238 = vadd.f32 %v236, 1.0
    %v239 = vadd.f32 %v237, 1.0
    %v240 = vmul.f32 %v232, %v238
    %v241 = vmul.f32 %v233, %v239
    %242 = vst [vmem:[#allocation11] sm:$0xff] %v240
    %243 = vst [vmem:[#allocation11 + $0x8] sm:$0xff] %v241
    // Predicated region
    $region42: #{tpu_custom_call.1} parent=1 // pred_check
      _
    $region43: #{tpu_custom_call.1} parent=1 // pred_check_branch
      %245 = sbr.rel (0) target = $region45
    $region44: #{tpu_custom_call.1} parent=1 // pred_region
      %s247 = ssub.s32 256, 256
      %248 = vsyncadd [#allocation4], %s247
      %s249 = sshll.u32 [#allocation11], 4
      %s250 = int_to_ptr.vmem [resolvable:$true] %s249
      %255 = dma.vmem_to_hbm [thread:$0]  %s250, 256, %s5, [#allocation4], 128, 128, 8
    $region45: #{tpu_custom_call.1} parent=1 // pred_fallthru
      _
    // Predicated region
    $region46: #{tpu_custom_call.1} parent=1 // pred_check
      _
    $region47: #{tpu_custom_call.1} parent=1 // pred_check_branch
      %257 = sbr.rel (0) target = $region49
    $region48: #{tpu_custom_call.1} parent=1 // pred_region
      %258 = dma.done [#allocation4], 256
    $region49: #{tpu_custom_call.1} parent=1 // pred_fallthru
      _
    %259 = vsyncpa [#allocation3], 1
    %260 = vsyncpa [#allocation6], 1
    %261 = vsyncpa [#allocation9], 1
    %262 = vsyncpa [#allocation4], 1

</llo_original>
